<compile_context>
chip_gen: v7x
topology: tpu7x:2x2x1
jax: 0.10.0
libtpu: 0.0.40
codegen_flags: <defaults>
</compile_context>

<pallas_src>
import functools

import jax
import jax.numpy as jnp
from jax import lax
from jax.experimental import pallas as pl
from jax.experimental.pallas import tpu as pltpu

_LANES = 128
_SUBLANES = 8
_CHUNK_ROWS = 128           # rows per inner fold step (16 f32 vregs per array)


def _tpu_generation():
    """Best-effort TPU generation (5, 6, 7, ...); 0 if unknown."""
    try:
        kind = jax.devices()[0].device_kind.lower()
    except Exception:
        return 0
    for gen in (7, 6, 5, 4):
        if f"v{gen}" in kind or f"tpu{gen}" in kind:
            return gen
    return 0


def _dice_bce_kernel(x_ref, t_ref, o_ref, *, n_elems, tile_rows, chunk_rows,
                     blocks_per_split, total_blocks, need_mask):
    s = pl.program_id(0)            # TensorCore split ("parallel")
    j = pl.program_id(1)            # reduction step within split ("arbitrary")

    @pl.when(j == 0)
    def _():
        o_ref[...] = jnp.zeros_like(o_ref)

    n_chunks = tile_rows // chunk_rows
    rem_rows = tile_rows - n_chunks * chunk_rows

    block_idx = s * blocks_per_split + j
    row_start = block_idx * tile_rows

    def chunk_stats(base, size, masked):
        """Fold a (size, 128) slice of the tile into three (8,128) partials."""
        x = x_ref[pl.ds(base, size), :].astype(jnp.float32)
        t = t_ref[pl.ds(base, size), :].astype(jnp.float32)
        if masked:
            # Zero everything at / past n_elems: wrapper zero-pad plus the
            # unspecified rows of a partial last block.
            full_rows = n_elems // _LANES
            tail = n_elems % _LANES
            row_id = lax.broadcasted_iota(jnp.int32, x.shape, 0) + (row_start + base)
            col_id = lax.broadcasted_iota(jnp.int32, x.shape, 1)
            valid = (row_id < full_rows) | ((row_id == full_rows) & (col_id < tail))
            x = jnp.where(valid, x, 0.0)
            t = jnp.where(valid, t, 0.0)
        x3 = x.reshape(size // _SUBLANES, _SUBLANES, _LANES)
        t3 = t.reshape(size // _SUBLANES, _SUBLANES, _LANES)
        inter = jnp.sum(x3 * t3, axis=0)          # sum(x * t)
        sxt = jnp.sum(x3 + t3, axis=0)            # sum(x) + sum(t)
        # PyTorch binary_cross_entropy clamps the log terms at -100.
        log_x = jnp.maximum(jnp.log(x3), -100.0)
        log_1mx = jnp.maximum(jnp.log(1.0 - x3), -100.0)
        # t*log(x) + (1-t)*log(1-x) == log_1mx + t*(log_x - log_1mx);
        # the final negation is applied once in the wrapper.
        bce = jnp.sum(log_1mx + t3 * (log_x - log_1mx), axis=0)
        return inter, sxt, bce

    def run(masked):
        if n_chunks > 1:
            def body(c, carry):
                i_acc, s_acc, b_acc = carry
                base = pl.multiple_of(c * chunk_rows, chunk_rows)
                di, dsx, dbc = chunk_stats(base, chunk_rows, masked)
                return (i_acc + di, s_acc + dsx, b_acc + dbc)

            zero = jnp.zeros((_SUBLANES, _LANES), jnp.float32)
            inter, sxt, bce = lax.fori_loop(0, n_chunks, body, (zero, zero, zero))
        else:
            inter, sxt, bce = chunk_stats(0, chunk_rows, masked)
        if rem_rows:
            di, dsx, dbc = chunk_stats(n_chunks * chunk_rows, rem_rows, masked)
            inter, sxt, bce = inter + di, sxt + dsx, bce + dbc

        o_ref[0, 0, :, :] += inter
        o_ref[0, 1, :, :] += sxt
        o_ref[0, 2, :, :] += bce

    if not need_mask:
        run(masked=False)                  # fast path: no iota/compare/select
    elif total_blocks == 1:
        run(masked=True)                   # single (ragged) block
    else:
        @pl.when(block_idx != total_blocks - 1)
        def _():
            run(masked=False)

        @pl.when(block_idx == total_blocks - 1)
        def _():
            run(masked=True)


def dice_bce_loss(inputs, targets, smooth=1.0, *, max_tile_rows=None):
    """Pallas-TPU DiceBCELoss. `inputs` are probabilities, any shape/dtype."""
    assert inputs.shape == targets.shape
    n_elems = inputs.size
    gen = _tpu_generation()

    if max_tile_rows is None:
        # ~2 MiB f32 per input block on v6e/v7x (amortizes per-step overhead);
        # 1 MiB on v5e / unknown chips (16 MiB default scoped VMEM).
        max_tile_rows = 4096 if gen >= 6 else 2048

    x = inputs.reshape(-1)     # free reshape; native dtype (kernel casts)
    t = targets.reshape(-1)

    # Lay out as (rows, 128).  Pads (copies) only when numel is not a multiple
    # of 8*128; padded zeros are masked in-kernel.
    # TODO(synk): avoid the pad copy for ragged sizes via a manual 1-D DMA tail.
    chunk = _SUBLANES * _LANES
    pad = (-n_elems) % chunk
    if pad:
        x = jnp.pad(x, (0, pad))
        t = jnp.pad(t, (0, pad))
    rows = x.size // _LANES
    x = x.reshape(rows, _LANES)
    t = t.reshape(rows, _LANES)

    tile_rows = min(max_tile_rows, rows)          # multiple of 8 by construction
    total_blocks = pl.cdiv(rows, tile_rows)

    # Split between the two TensorCores only on v7x and only when the block
    # count divides evenly, so no step fetches a duplicate/clamped block.
    n_splits = 2 if (gen >= 7 and total_blocks % 2 == 0) else 1
    blocks_per_split = total_blocks // n_splits
    grid = (n_splits, blocks_per_split)

    # Mask only if the last block reaches past n_elems (ragged tail / pad /
    # partial last block); every other block takes the unmasked fast path.
    need_mask = (total_blocks * tile_rows * _LANES) != n_elems

    kernel = functools.partial(
        _dice_bce_kernel,
        n_elems=n_elems,
        tile_rows=tile_rows,
        chunk_rows=min(_CHUNK_ROWS, tile_rows),
        blocks_per_split=blocks_per_split,
        total_blocks=total_blocks,
        need_mask=need_mask,
    )

    in_spec = pl.BlockSpec((tile_rows, _LANES),
                           lambda sp, jj: (sp * blocks_per_split + jj, 0))

    partials = pl.pallas_call(
        kernel,
        out_shape=jax.ShapeDtypeStruct(
            (n_splits, 3, _SUBLANES, _LANES), jnp.float32),
        grid_spec=pltpu.PrefetchScalarGridSpec(
            num_scalar_prefetch=0,
            grid=grid,
            in_specs=[in_spec, in_spec],
            out_specs=pl.BlockSpec(
                (1, 3, _SUBLANES, _LANES), lambda sp, jj: (sp, 0, 0, 0)),
        ),
        compiler_params=pltpu.CompilerParams(
            dimension_semantics=("parallel", "arbitrary")),
    )(x, t)

    # Single tiny cross-lane reduction + scalar math outside the kernel.
    sums = jnp.sum(partials, axis=(0, 2, 3))      # (3,)
    inter, sxt, bce_neg_sum = sums[0], sums[1], sums[2]
    dice_loss = 1.0 - (2.0 * inter + smooth) / (sxt + smooth)
    bce = -bce_neg_sum / n_elems
    return bce + dice_loss


def _reference(inputs, targets, smooth=1.0):
    x = inputs.reshape(-1).astype(jnp.float32)
    t = targets.reshape(-1).astype(jnp.float32)
    inter = jnp.sum(x * t)
    dice = 1.0 - (2.0 * inter + smooth) / (jnp.sum(x) + jnp.sum(t) + smooth)
    bce = jnp.mean(
        -(t * jnp.maximum(jnp.log(x), -100.0)
          + (1.0 - t) * jnp.maximum(jnp.log(1.0 - x), -100.0)))
    return bce + dice


if __name__ == "__main__":
    key = jax.random.PRNGKey(0)
    k1, k2 = jax.random.split(key)

    def make(shape, dtype=jnp.float32):
        x = jax.nn.sigmoid(jax.random.normal(k1, shape, dtype=jnp.float32))
        t = (jax.random.uniform(k2, shape) > 0.5).astype(jnp.float32)
        return x.astype(dtype), t.astype(dtype)

    # 1) Main case: small NCHW probabilities, aligned -> unmasked fast path.
    x, t = make((2, 4, 16, 16))
    loss = dice_bce_loss(x, t, smooth=1.0)
    jax.block_until_ready(loss)
    ref = _reference(x, t, smooth=1.0)
    assert jnp.allclose(loss, ref, rtol=1e-5, atol=1e-5), (loss, ref)

    # 2) Native bf16 inputs go straight into the kernel (no wrapper cast).
    xb, tb = make((2, 4, 16, 16), jnp.bfloat16)
    loss_b = dice_bce_loss(xb, tb, smooth=1.0)
    jax.block_until_ready(loss_b)
    ref_b = _reference(xb, tb, smooth=1.0)
    assert jnp.allclose(loss_b, ref_b, rtol=2e-3, atol=2e-3), (loss_b, ref_b)

    # 3) Ragged element count -> single masked block.
    x, t = make((2, 3, 11, 13))
    loss = dice_bce_loss(x, t, smooth=1.0)
    jax.block_until_ready(loss)
    ref = _reference(x, t, smooth=1.0)
    assert jnp.allclose(loss, ref, rtol=1e-5, atol=1e-5), (loss, ref)

    # 4) Multi-chunk inner fold (fori_loop) plus remainder chunk, unmasked.
    x, t = make((2, 4, 64, 72))
    loss = dice_bce_loss(x, t, smooth=1.0)
    jax.block_until_ready(loss)
    ref = _reference(x, t, smooth=1.0)
    assert jnp.allclose(loss, ref, rtol=1e-5, atol=1e-5), (loss, ref)

    # 5) Multi-block reduction with a masked partial last block (tiny tiles).
    x, t = make((1, 1, 70, 71))
    loss = dice_bce_loss(x, t, smooth=1.0, max_tile_rows=16)
    jax.block_until_ready(loss)
    ref = _reference(x, t, smooth=1.0)
    assert jnp.allclose(loss, ref, rtol=1e-5, atol=1e-5), (loss, ref)

    print("KERNEL_OK")
</pallas_src>

<mosaic_0001>
module attributes {stable_mosaic.version = 11 : i64} {
  func.func @_dice_bce_kernel(%arg0: i32, %arg1: i32, %arg2: memref<16x128xf32, #tpu.memory_space<vmem>>, %arg3: memref<16x128xf32, #tpu.memory_space<vmem>>, %arg4: memref<1x3x8x128xf32, #tpu.memory_space<vmem>>) attributes {dimension_semantics = [#tpu.dimension_semantics<parallel>, #tpu.dimension_semantics<arbitrary>], iteration_bounds = array<i64: 1, 1>, scalar_prefetch = 0 : i64, scratch_operands = 0 : i64, tpu.core_type = #tpu.core_type<tc>, window_params = [{transform_indices = @transform_0, window_bounds = array<i64: 16, 128>}, {transform_indices = @transform_1, window_bounds = array<i64: 16, 128>}, {transform_indices = @transform_2, window_bounds = array<i64: 1, 3, 8, 128>}]} {
    %c0_i32 = arith.constant 0 : i32
    %0 = arith.cmpi eq, %arg1, %c0_i32 : i32
    %1 = arith.extui %0 : i1 to i32
    %c0_i32_0 = arith.constant 0 : i32
    %2 = arith.cmpi ne, %1, %c0_i32_0 : i32
    scf.if %2 {
      %cst_31 = arith.constant 0.000000e+00 : f32
      %41 = vector.broadcast %cst_31 : f32 to vector<1x3x8x128xf32>
      %c0_32 = arith.constant 0 : index
      %c0_33 = arith.constant 0 : index
      %c0_34 = arith.constant 0 : index
      %c0_35 = arith.constant 0 : index
      %42 = vector.load %arg4[%c0_32, %c0_33, %c0_34, %c0_35] : memref<1x3x8x128xf32, #tpu.memory_space<vmem>>, vector<1x3x8x128xf32>
      tpu.vector_store %arg4[%c0_32, %c0_33, %c0_34, %c0_35], %41 {strides = array<i32>} : memref<1x3x8x128xf32, #tpu.memory_space<vmem>>, vector<1x3x8x128xf32>,
    } else {
    }
    %c0 = arith.constant 0 : index
    %c0_1 = arith.constant 0 : index
    %3 = vector.load %arg2[%c0, %c0_1] : memref<16x128xf32, #tpu.memory_space<vmem>>, vector<16x128xf32>
    %c0_2 = arith.constant 0 : index
    %c0_3 = arith.constant 0 : index
    %4 = vector.load %arg3[%c0_2, %c0_3] : memref<16x128xf32, #tpu.memory_space<vmem>>, vector<16x128xf32>
    %5 = vector.shape_cast %3 : vector<16x128xf32> to vector<2x8x128xf32>
    %6 = vector.shape_cast %4 : vector<16x128xf32> to vector<2x8x128xf32>
    %7 = arith.mulf %5, %6 : vector<2x8x128xf32>
    %cst = arith.constant dense<0.000000e+00> : vector<8x128xf32>
    %8 = vector.multi_reduction <add>, %7, %cst [0] : vector<2x8x128xf32> to vector<8x128xf32>
    %9 = arith.addf %5, %6 : vector<2x8x128xf32>
    %cst_4 = arith.constant dense<0.000000e+00> : vector<8x128xf32>
    %10 = vector.multi_reduction <add>, %9, %cst_4 [0] : vector<2x8x128xf32> to vector<8x128xf32>
    %11 = math.log %5 : vector<2x8x128xf32>
    %cst_5 = arith.constant -1.000000e+02 : f32
    %12 = vector.broadcast %cst_5 : f32 to vector<2x8x128xf32>
    %13 = arith.maximumf %11, %12 : vector<2x8x128xf32>
    %cst_6 = arith.constant 1.000000e+00 : f32
    %14 = vector.broadcast %cst_6 : f32 to vector<2x8x128xf32>
    %15 = arith.subf %14, %5 : vector<2x8x128xf32>
    %16 = math.log %15 : vector<2x8x128xf32>
    %cst_7 = arith.constant -1.000000e+02 : f32
    %17 = vector.broadcast %cst_7 : f32 to vector<2x8x128xf32>
    %18 = arith.maximumf %16, %17 : vector<2x8x128xf32>
    %19 = arith.subf %13, %18 : vector<2x8x128xf32>
    %20 = arith.mulf %6, %19 : vector<2x8x128xf32>
    %21 = arith.addf %18, %20 : vector<2x8x128xf32>
    %cst_8 = arith.constant dense<0.000000e+00> : vector<8x128xf32>
    %22 = vector.multi_reduction <add>, %21, %cst_8 [0] : vector<2x8x128xf32> to vector<8x128xf32>
    %c0_9 = arith.constant 0 : index
    %c0_10 = arith.constant 0 : index
    %c0_11 = arith.constant 0 : index
    %c0_12 = arith.constant 0 : index
    %23 = vector.load %arg4[%c0_9, %c0_10, %c0_11, %c0_12] : memref<1x3x8x128xf32, #tpu.memory_space<vmem>>, vector<1x1x8x128xf32>
    %24 = vector.shape_cast %23 : vector<1x1x8x128xf32> to vector<8x128xf32>
    %25 = arith.addf %24, %8 : vector<8x128xf32>
    %c0_13 = arith.constant 0 : index
    %c0_14 = arith.constant 0 : index
    %c0_15 = arith.constant 0 : index
    %c0_16 = arith.constant 0 : index
    %26 = vector.load %arg4[%c0_13, %c0_14, %c0_15, %c0_16] : memref<1x3x8x128xf32, #tpu.memory_space<vmem>>, vector<1x1x8x128xf32>
    %27 = vector.shape_cast %26 : vector<1x1x8x128xf32> to vector<8x128xf32>
    %28 = vector.shape_cast %25 : vector<8x128xf32> to vector<1x1x8x128xf32>
    tpu.vector_store %arg4[%c0_13, %c0_14, %c0_15, %c0_16], %28 {strides = array<i32>} : memref<1x3x8x128xf32, #tpu.memory_space<vmem>>, vector<1x1x8x128xf32>,
    %c0_17 = arith.constant 0 : index
    %c1 = arith.constant 1 : index
    %c0_18 = arith.constant 0 : index
    %c0_19 = arith.constant 0 : index
    %29 = vector.load %arg4[%c0_17, %c1, %c0_18, %c0_19] : memref<1x3x8x128xf32, #tpu.memory_space<vmem>>, vector<1x1x8x128xf32>
    %30 = vector.shape_cast %29 : vector<1x1x8x128xf32> to vector<8x128xf32>
    %31 = arith.addf %30, %10 : vector<8x128xf32>
    %c0_20 = arith.constant 0 : index
    %c1_21 = arith.constant 1 : index
    %c0_22 = arith.constant 0 : index
    %c0_23 = arith.constant 0 : index
    %32 = vector.load %arg4[%c0_20, %c1_21, %c0_22, %c0_23] : memref<1x3x8x128xf32, #tpu.memory_space<vmem>>, vector<1x1x8x128xf32>
    %33 = vector.shape_cast %32 : vector<1x1x8x128xf32> to vector<8x128xf32>
    %34 = vector.shape_cast %31 : vector<8x128xf32> to vector<1x1x8x128xf32>
    tpu.vector_store %arg4[%c0_20, %c1_21, %c0_22, %c0_23], %34 {strides = array<i32>} : memref<1x3x8x128xf32, #tpu.memory_space<vmem>>, vector<1x1x8x128xf32>,
    %c0_24 = arith.constant 0 : index
    %c2 = arith.constant 2 : index
    %c0_25 = arith.constant 0 : index
    %c0_26 = arith.constant 0 : index
    %35 = vector.load %arg4[%c0_24, %c2, %c0_25, %c0_26] : memref<1x3x8x128xf32, #tpu.memory_space<vmem>>, vector<1x1x8x128xf32>
    %36 = vector.shape_cast %35 : vector<1x1x8x128xf32> to vector<8x128xf32>
    %37 = arith.addf %36, %22 : vector<8x128xf32>
    %c0_27 = arith.constant 0 : index
    %c2_28 = arith.constant 2 : index
    %c0_29 = arith.constant 0 : index
    %c0_30 = arith.constant 0 : index
    %38 = vector.load %arg4[%c0_27, %c2_28, %c0_29, %c0_30] : memref<1x3x8x128xf32, #tpu.memory_space<vmem>>, vector<1x1x8x128xf32>
    %39 = vector.shape_cast %38 : vector<1x1x8x128xf32> to vector<8x128xf32>
    %40 = vector.shape_cast %37 : vector<8x128xf32> to vector<1x1x8x128xf32>
    tpu.vector_store %arg4[%c0_27, %c2_28, %c0_29, %c0_30], %40 {strides = array<i32>} : memref<1x3x8x128xf32, #tpu.memory_space<vmem>>, vector<1x1x8x128xf32>,
    return
  }
  func.func @transform_0(%arg0: i32, %arg1: i32) -> (i32, i32) {
    %c1_i32 = arith.constant 1 : i32
    %0 = arith.muli %arg0, %c1_i32 : i32
    %1 = arith.addi %0, %arg1 : i32
    %c0_i32 = arith.constant 0 : i32
    %c0_i32_0 = arith.constant 0 : i32
    return %1, %c0_i32 : i32, i32
  }
  func.func @transform_1(%arg0: i32, %arg1: i32) -> (i32, i32) {
    %c1_i32 = arith.constant 1 : i32
    %0 = arith.muli %arg0, %c1_i32 : i32
    %1 = arith.addi %0, %arg1 : i32
    %c0_i32 = arith.constant 0 : i32
    %c0_i32_0 = arith.constant 0 : i32
    return %1, %c0_i32 : i32, i32
  }
  func.func @transform_2(%arg0: i32, %arg1: i32) -> (i32, i32, i32, i32) {
    %c0_i32 = arith.constant 0 : i32
    %c0_i32_0 = arith.constant 0 : i32
    %c0_i32_1 = arith.constant 0 : i32
    %c0_i32_2 = arith.constant 0 : i32
    return %arg0, %c0_i32, %c0_i32_0, %c0_i32_1 : i32, i32, i32, i32
  }
}

</mosaic_0001>

<llo_original>
// kernel: tpu_custom_call.1
$region0: #{tpu_custom_call.1}
  #allocation0 [shape = 'u32[]', space=smem, size = 0x4, offset = 0x4, fixed_abs, tag = 'smem constant byte address 0x4 - core index']
  #allocation1 [shape = 'u32[144,128]{1,0:T(1,128)}', space=vmem, size = 0x12000, scoped, tag = 'internal scratch']
  %s0 = inlined_call_operand.hbm [shape: f32[16,128], index: 0, kind: input, shape index: {}]
  %s1 = inlined_call_operand.hbm [shape: f32[16,128], index: 1, kind: input, shape index: {}]
  %s2 = inlined_call_operand.hbm [shape: f32[1,3,8,128], index: 2, kind: output, shape index: {}]
  %s3 = sld [smem:[#allocation0]]
  $region30: #{tpu_custom_call.1} parent=0
    _
  %s5 = ssub.s32 1, %s3
  %s6 = scalar_select 0, %s5, %s3
  $region1: #{tpu_custom_call.1} parent=0
    #allocation2 [shape = 'u8[8192]{0}', space=vmem, size = 0x2000, scoped, tag = 'input window, operand 0, single buffered']
    #allocation3 [shape = 's32[1]{0}', space=sflag, size = 0x4, scoped, tag = 'scoped memory for tpu_custom_call.1']
    #allocation4 [shape = 's32[1]{0}', space=sflag, size = 0x4, scoped, tag = 'scoped memory for tpu_custom_call.1']
    #allocation5 [shape = 'u8[8192]{0}', space=vmem, size = 0x2000, scoped, tag = 'input window, operand 1, single buffered']
    #allocation6 [shape = 's32[1]{0}', space=sflag, size = 0x4, scoped, tag = 'scoped memory for tpu_custom_call.1']
    #allocation7 [shape = 'u8[12288]{0}', space=vmem, size = 0x3000, scoped, tag = 'output window, operand 0, single buffered']
    %7 = vsyncpa [#allocation3], 0
    %8 = vsyncpa [#allocation6], 0
    %9 = vsyncpa [#allocation4], 0
    // Predicated region
    $region2: #{tpu_custom_call.1} parent=1 // pred_check
      _
    $region3: #{tpu_custom_call.1} parent=1 // pred_check_branch
      %11 = sbr.rel (0) target = $region5
    $region4: #{tpu_custom_call.1} parent=1 // pred_region
      %s12 = sadd.s32 0, 0
      %s13 = smul.u32 2, %s12
      %s15 = ssub.s32 256, 256
      %16 = vsyncadd [#allocation3], %s15
      %s17 = smul.addr %s13, 128
      %s18 = scalar_lea.hbm %s0, %s17
      %s19 = sshll.u32 [#allocation2], 4
      %s20 = int_to_ptr.vmem [resolvable:$true] %s19
      %25 = dma.hbm_to_vmem [thread:$0]  %s18, 256, %s20, [#allocation3], 128, 128, 8
    $region5: #{tpu_custom_call.1} parent=1 // pred_fallthru
      _
    // Predicated region
    $region6: #{tpu_custom_call.1} parent=1 // pred_check
      _
    $region7: #{tpu_custom_call.1} parent=1 // pred_check_branch
      %27 = sbr.rel (0) target = $region9
    $region8: #{tpu_custom_call.1} parent=1 // pred_region
      %s28 = sadd.s32 0, 0
      %s29 = smul.u32 2, %s28
      %s31 = ssub.s32 256, 256
      %32 = vsyncadd [#allocation6], %s31
      %s33 = smul.addr %s29, 128
      %s34 = scalar_lea.hbm %s1, %s33
      %s35 = sshll.u32 [#allocation5], 4
      %s36 = int_to_ptr.vmem [resolvable:$true] %s35
      %41 = dma.hbm_to_vmem [thread:$0]  %s34, 256, %s36, [#allocation6], 128, 128, 8
    $region9: #{tpu_custom_call.1} parent=1 // pred_fallthru
      _
    // Predicated region
    $region10: #{tpu_custom_call.1} parent=1 // pred_check
      _
    $region11: #{tpu_custom_call.1} parent=1 // pred_check_branch
      %43 = sbr.rel (0) target = $region13
    $region12: #{tpu_custom_call.1} parent=1 // pred_region
      %44 = dma.done [#allocation3], 256
    $region13: #{tpu_custom_call.1} parent=1 // pred_fallthru
      _
    // Predicated region
    $region14: #{tpu_custom_call.1} parent=1 // pred_check
      _
    $region15: #{tpu_custom_call.1} parent=1 // pred_check_branch
      %46 = sbr.rel (0) target = $region17
    $region16: #{tpu_custom_call.1} parent=1 // pred_region
      %47 = dma.done [#allocation6], 256
    $region17: #{tpu_custom_call.1} parent=1 // pred_fallthru
      _
    %s48 = sadd.s32 0, 0
    %s49 = smul.u32 2, %s48
    %s50 = sadd.s32 0, 0
    %s51 = smul.u32 2, %s50
    %p52 = scmp.eq.s32.totalorder 0, 0
    // Predicated region
    $region18: #{tpu_custom_call.1} parent=1 // pred_check
      %p53 = pneg %p52
    $region19: #{tpu_custom_call.1} parent=1 // pred_check_branch
      %55 = sbr.rel (%p53) target = $region21
    $region20: #{tpu_custom_call.1} parent=1 // pred_region
      %56 = vst [vmem:[#allocation7] sm:$0xff] 0.0
      %57 = vst [vmem:[#allocation7 + $0x8] sm:$0xff] 0.0
      %58 = vst [vmem:[#allocation7 + $0x10] sm:$0xff] 0.0
    $region21: #{tpu_custom_call.1} parent=1 // pred_fallthru
      _
    %v59 = vld [vmem:[#allocation2] sm:$0xff]
    %v60 = vld [vmem:[#allocation2 + $0x8] sm:$0xff]
    %v61 = vld [vmem:[#allocation5] sm:$0xff]
    %v62 = vld [vmem:[#allocation5 + $0x8] sm:$0xff]
    %v63 = vmul.f32 %v59, %v61
    %v64 = vmul.f32 %v60, %v62
    %v65 = vadd.f32 %v63, %v64
    %v66 = vadd.f32 %v59, %v61
    %v67 = vadd.f32 %v60, %v62
    %v68 = vadd.f32 %v66, %v67
    %v69 = vlog2.pop %v59
    %v70 = vmul.f32 %v69, 0.6931472
    %v71 = vlog2.pop %v60
    %v72 = vmul.f32 %v71, 0.6931472
    %v73 = vmax.f32 %v70, -100.0
    %v74 = vmax.f32 %v72, -100.0
    %v75 = vsub.f32 1.0, %v59
    %v76 = vsub.f32 1.0, %v60
    %v77 = vlog2.pop %v75
    %v78 = vmul.f32 %v77, 0.6931472
    %v79 = vlog2.pop %v76
    %v80 = vmul.f32 %v79, 0.6931472
    %v81 = vmax.f32 %v78, -100.0
    %v82 = vmax.f32 %v80, -100.0
    %v83 = vsub.f32 %v73, %v81
    %v84 = vsub.f32 %v74, %v82
    %v85 = vmul.f32 %v61, %v83
    %v86 = vmul.f32 %v62, %v84
    %v87 = vadd.f32 %v81, %v85
    %v88 = vadd.f32 %v82, %v86
    %v89 = vadd.f32 %v87, %v88
    %v90 = vld [vmem:[#allocation7] sm:$0xff]
    %v91 = vadd.f32 %v90, %v65
    %92 = vst [vmem:[#allocation7] sm:$0xff] %v91
    %s93 = scalar_lea.vmem [#allocation7], 8
    %v94 = vld [vmem:[%s93] sm:$0xff]
    %v95 = vadd.f32 %v94, %v68
    %96 = vst [vmem:[%s93] sm:$0xff] %v95
    %s97 = scalar_lea.vmem [#allocation7], 16
    %v98 = vld [vmem:[%s97] sm:$0xff]
    %v99 = vadd.f32 %v98, %v89
    %100 = vst [vmem:[%s97] sm:$0xff] %v99
    // Predicated region
    $region22: #{tpu_custom_call.1} parent=1 // pred_check
      _
    $region23: #{tpu_custom_call.1} parent=1 // pred_check_branch
      %102 = sbr.rel (0) target = $region25
    $region24: #{tpu_custom_call.1} parent=1 // pred_region
      %s104 = ssub.s32 384, 384
      %105 = vsyncadd [#allocation4], %s104
      %s106 = sshll.u32 [#allocation7], 4
      %s107 = int_to_ptr.vmem [resolvable:$true] %s106
      %112 = dma.vmem_to_hbm [thread:$0]  %s107, 384, %s2, [#allocation4], 128, 128, 8
    $region25: #{tpu_custom_call.1} parent=1 // pred_fallthru
      _
    // Predicated region
    $region26: #{tpu_custom_call.1} parent=1 // pred_check
      _
    $region27: #{tpu_custom_call.1} parent=1 // pred_check_branch
      %114 = sbr.rel (0) target = $region29
    $region28: #{tpu_custom_call.1} parent=1 // pred_region
      %115 = dma.done [#allocation4], 384
    $region29: #{tpu_custom_call.1} parent=1 // pred_fallthru
      _
    %116 = vsyncpa [#allocation3], 1
    %117 = vsyncpa [#allocation6], 1
    %118 = vsyncpa [#allocation4], 1

</llo_original>
